<compile_context>
chip_gen: v7x
topology: tpu7x:2x2x1
jax: 0.10.0
libtpu: 0.0.40
codegen_flags: <defaults>
</compile_context>

<pallas_src>
import jax
import jax.numpy as jnp
from jax.experimental import pallas as pl
from jax.experimental.pallas import tpu as pltpu


_HIDDEN = 256  # fixed by nn.Linear(obs_shape, 256)


def _sublane_multiple(*dtypes):
    """Required sublane multiple for the second-minor block dim."""
    m = 8
    for dt in dtypes:
        nb = jnp.dtype(dt).itemsize
        if nb == 2:
            m = max(m, 16)
        elif nb == 1:
            m = max(m, 32)
    return m


def _round_up(x, m):
    return ((x + m - 1) // m) * m


def _cost_estimate(B, K, N, x_dtype, w_dtype, out_dtype):
    bytes_accessed = (B * K * jnp.dtype(x_dtype).itemsize
                      + K * N * jnp.dtype(w_dtype).itemsize
                      + N * 4                                  # bias (f32)
                      + B * N * jnp.dtype(out_dtype).itemsize)
    return pl.CostEstimate(flops=2 * B * K * N,
                           transcendentals=0,
                           bytes_accessed=bytes_accessed)


def _linear_relu_kernel(x_ref, w_ref, b_ref, o_ref):
    # x_ref: [TB, K]  w_ref: [K, N]  b_ref: [1, N]  o_ref: [TB, N]
    # Single MXU matmul with an f32 accumulator; bias add + ReLU happen on the
    # f32 accumulator (v5e-safe even when inputs are bf16).
    acc = jnp.dot(x_ref[...], w_ref[...], preferred_element_type=jnp.float32)
    acc = acc + b_ref[...]
    o_ref[...] = jnp.maximum(acc, 0.0).astype(o_ref.dtype)


def high_level_model_forward(x, w_t, b, *, block_b=1024, compute_dtype=None,
                             out_dtype=None, x_buffer_count=None,
                             gridless_batch=256,
                             gridless_vmem_budget=8 * 1024 * 1024):
    """Forward pass of HighLevelModel: relu(x @ W^T + b).

    Args:
      x:   [B, obs_shape] float32 (or bf16).
      w_t: [obs_shape, 256]  (transposed PyTorch weight).
      b:   [256] bias.
      block_b: max batch tile for the tiled path (default 1024; mem-bound
        sweet spot, ~5-6 MiB double-buffered VMEM at 2048 — fits all gens).
      compute_dtype: optional dtype (e.g. jnp.bfloat16) for x/w on the MXU;
        accumulation stays float32.
      out_dtype: optional output dtype (bf16 halves the dominant store stream).
      x_buffer_count: optional pipeline depth (>2) for the thin x stream.
      gridless_batch / gridless_vmem_budget: gates on the single-tile path.
    Returns:
      [B, 256] in out_dtype (defaults to x.dtype).
    """
    B, K = x.shape
    K2, N = w_t.shape
    assert K == K2 and N == _HIDDEN
    out_dtype = out_dtype or x.dtype
    if compute_dtype is not None:
        x = x.astype(compute_dtype)
        w_t = w_t.astype(compute_dtype)
    b2d = b.reshape(1, N).astype(jnp.float32)

    cost = _cost_estimate(B, K, N, x.dtype, w_t.dtype, out_dtype)

    gridless_bytes = (B * K * x.dtype.itemsize
                      + K * N * w_t.dtype.itemsize
                      + N * 4
                      + B * N * jnp.dtype(out_dtype).itemsize)
    if B <= gridless_batch and gridless_bytes <= gridless_vmem_budget:
        # Single tile: gridless call — whole operands resident in VMEM, no
        # pipeline prologue/epilogue, no double buffering. (At B~8 the fixed
        # custom-call dispatch dominates anyway; nothing to micro-tune here.)
        return pl.pallas_call(
            _linear_relu_kernel,
            out_shape=jax.ShapeDtypeStruct((B, N), out_dtype),
            cost_estimate=cost,
        )(x, w_t, b2d)

    # Batch-tiled path: large tiles amortize per-step overhead, weight/bias
    # stay resident (constant block index), and the batch axis is "parallel"
    # so v7x's two TensorCores split it.
    mult = _sublane_multiple(x.dtype, out_dtype)
    # Ensure >= 2 grid steps (both TCs busy on v7x) while capping at block_b.
    tb = min(block_b, _round_up(pl.cdiv(B, 2), mult))
    tb = max(mult, (tb // mult) * mult)
    grid = (pl.cdiv(B, tb),)

    x_spec_kwargs = {}
    if x_buffer_count is not None and x_buffer_count > 2:
        x_spec_kwargs["pipeline_mode"] = pl.Buffered(x_buffer_count)

    return pl.pallas_call(
        _linear_relu_kernel,
        out_shape=jax.ShapeDtypeStruct((B, N), out_dtype),
        grid_spec=pltpu.PrefetchScalarGridSpec(
            num_scalar_prefetch=0,
            grid=grid,
            in_specs=[
                pl.BlockSpec((tb, K), lambda i: (i, 0), **x_spec_kwargs),
                pl.BlockSpec((K, N), lambda i: (0, 0)),   # resident weight
                pl.BlockSpec((1, N), lambda i: (0, 0)),   # resident bias
            ],
            out_specs=pl.BlockSpec((tb, N), lambda i: (i, 0)),
        ),
        compiler_params=pltpu.CompilerParams(
            dimension_semantics=("parallel",),
        ),
        cost_estimate=cost,
    )(x, w_t, b2d)


if __name__ == "__main__":
    key = jax.random.PRNGKey(0)
    k_x, k_w, k_b, k_x2, k_x3 = jax.random.split(key, 5)

    obs_shape = 64
    hidden = 256
    batch = 8

    # Deterministic PyTorch-like init: U(-1/sqrt(fan_in), 1/sqrt(fan_in))
    bound = 1.0 / jnp.sqrt(jnp.float32(obs_shape))
    w = jax.random.uniform(k_w, (hidden, obs_shape),
                           minval=-bound, maxval=bound, dtype=jnp.float32)
    b = jax.random.uniform(k_b, (hidden,),
                           minval=-bound, maxval=bound, dtype=jnp.float32)

    # 1) Tiny batch -> gridless path (f32, bit-tight check).
    x = jax.random.normal(k_x, (batch, obs_shape), dtype=jnp.float32)
    out = jax.block_until_ready(high_level_model_forward(x, w.T, b))
    ref = jnp.maximum(x @ w.T + b, 0.0)
    assert out.shape == (batch, hidden)
    assert jnp.allclose(out, ref, atol=1e-5, rtol=1e-5)

    # 2) Larger batch -> tiled "parallel" path, 2 grid steps of 1024 rows.
    big_batch = 2048
    xb = jax.random.normal(k_x2, (big_batch, obs_shape), dtype=jnp.float32)
    out_b = jax.block_until_ready(high_level_model_forward(xb, w.T, b))
    ref_b = jnp.maximum(xb @ w.T + b, 0.0)
    assert out_b.shape == (big_batch, hidden)
    assert jnp.allclose(out_b, ref_b, atol=1e-5, rtol=1e-5)

    # 3) Non-multiple batch -> exercises the partial last block clipping.
    odd_batch = 520
    xo = jax.random.normal(k_x3, (odd_batch, obs_shape), dtype=jnp.float32)
    out_o = jax.block_until_ready(high_level_model_forward(xo, w.T, b))
    ref_o = jnp.maximum(xo @ w.T + b, 0.0)
    assert out_o.shape == (odd_batch, hidden)
    assert jnp.allclose(out_o, ref_o, atol=1e-5, rtol=1e-5)

    # 4) bf16 compute + bf16 output stream (halves HBM traffic), f32 MXU acc.
    out_h = jax.block_until_ready(
        high_level_model_forward(xb, w.T, b,
                                 compute_dtype=jnp.bfloat16,
                                 out_dtype=jnp.bfloat16))
    assert out_h.dtype == jnp.bfloat16 and out_h.shape == (big_batch, hidden)
    assert jnp.allclose(out_h.astype(jnp.float32), ref_b, atol=0.03, rtol=0.03)

    print("KERNEL_OK")
</pallas_src>

<mosaic_0001>
module attributes {stable_mosaic.version = 11 : i64} {
  func.func @_linear_relu_kernel(%arg0: memref<8x64xf32, #tpu.memory_space<vmem>>, %arg1: memref<64x256xf32, #tpu.memory_space<vmem>>, %arg2: memref<1x256xf32, #tpu.memory_space<vmem>>, %arg3: memref<8x256xf32, #tpu.memory_space<vmem>>) attributes {dimension_semantics = [], scalar_prefetch = 0 : i64, scratch_operands = 0 : i64, tpu.core_type = #tpu.core_type<tc>} {
    %c0 = arith.constant 0 : index
    %c0_0 = arith.constant 0 : index
    %0 = vector.load %arg0[%c0, %c0_0] : memref<8x64xf32, #tpu.memory_space<vmem>>, vector<8x64xf32>
    %c0_1 = arith.constant 0 : index
    %c0_2 = arith.constant 0 : index
    %1 = vector.load %arg1[%c0_1, %c0_2] : memref<64x256xf32, #tpu.memory_space<vmem>>, vector<64x256xf32>
    %cst = arith.constant dense<0.000000e+00> : vector<8x256xf32>
    %2 = tpu.matmul %0, %1, %cst {dimension_numbers = #tpu.dot_dimension_numbers<[1], [0], [0], [1], [0, 0, 1, 1], [], []>} : vector<8x64xf32>, vector<64x256xf32>, vector<8x256xf32> -> vector<8x256xf32>
    %c0_3 = arith.constant 0 : index
    %c0_4 = arith.constant 0 : index
    %3 = vector.load %arg2[%c0_3, %c0_4] : memref<1x256xf32, #tpu.memory_space<vmem>>, vector<1x256xf32>
    %4 = vector.broadcast %3 : vector<1x256xf32> to vector<8x256xf32>
    %5 = arith.addf %2, %4 : vector<8x256xf32>
    %cst_5 = arith.constant 0.000000e+00 : f32
    %6 = vector.broadcast %cst_5 : f32 to vector<8x256xf32>
    %7 = arith.maximumf %5, %6 : vector<8x256xf32>
    %c0_6 = arith.constant 0 : index
    %c0_7 = arith.constant 0 : index
    %8 = vector.load %arg3[%c0_6, %c0_7] : memref<8x256xf32, #tpu.memory_space<vmem>>, vector<8x256xf32>
    tpu.vector_store %arg3[%c0_6, %c0_7], %7 {strides = array<i32>} : memref<8x256xf32, #tpu.memory_space<vmem>>, vector<8x256xf32>,
    return
  }
}

</mosaic_0001>

<llo_original>
// kernel: tpu_custom_call.1
$region0: #{tpu_custom_call.1}
  #allocation0 [shape = 'u32[]', space=smem, size = 0x4, offset = 0x4, fixed_abs, tag = 'smem constant byte address 0x4 - core index']
  #allocation1 [shape = 'u32[144,128]{1,0:T(1,128)}', space=vmem, size = 0x12000, scoped, tag = 'internal scratch']
  %s0 = inlined_call_operand.hbm [shape: f32[8,64], index: 0, kind: input, shape index: {}]
  %s1 = inlined_call_operand.hbm [shape: f32[64,256], index: 1, kind: input, shape index: {}]
  %s2 = inlined_call_operand.vmem [shape: f32[1,256], index: 2, kind: input, shape index: {}]
  %s3 = inlined_call_operand.hbm [shape: f32[8,256], index: 3, kind: output, shape index: {}]
  %s4 = sld [smem:[#allocation0]]
  $region30: #{tpu_custom_call.1} parent=0
    _
  %s6 = ssub.s32 1, %s4
  %s7 = scalar_select 0, %s6, %s4
  $region1: #{tpu_custom_call.1} parent=0
    #allocation2 [shape = 'u8[4096]{0}', space=vmem, size = 0x1000, scoped, tag = 'input window, operand 0, single buffered']
    #allocation3 [shape = 's32[1]{0}', space=sflag, size = 0x4, scoped, tag = 'scoped memory for tpu_custom_call.1']
    #allocation4 [shape = 's32[1]{0}', space=sflag, size = 0x4, scoped, tag = 'scoped memory for tpu_custom_call.1']
    #allocation5 [shape = 'u8[65536]{0}', space=vmem, size = 0x10000, scoped, tag = 'input window, operand 1, single buffered']
    #allocation6 [shape = 's32[1]{0}', space=sflag, size = 0x4, scoped, tag = 'scoped memory for tpu_custom_call.1']
    #allocation7 [shape = 'u8[8192]{0}', space=vmem, size = 0x2000, scoped, tag = 'output window, operand 0, single buffered']
    %8 = vsyncpa [#allocation3], 0
    %9 = vsyncpa [#allocation6], 0
    %10 = vsyncpa [#allocation4], 0
    // Predicated region
    $region2: #{tpu_custom_call.1} parent=1 // pred_check
      _
    $region3: #{tpu_custom_call.1} parent=1 // pred_check_branch
      %12 = sbr.rel (0) target = $region5
    $region4: #{tpu_custom_call.1} parent=1 // pred_region
      %s14 = ssub.s32 128, 128
      %15 = vsyncadd [#allocation3], %s14
      %s17 = sshll.u32 [#allocation2], 4
      %s18 = int_to_ptr.vmem [resolvable:$true] %s17
      %20 = dma.hbm_to_vmem [thread:$0]  %s0, 128, %s18, [#allocation3]
    $region5: #{tpu_custom_call.1} parent=1 // pred_fallthru
      _
    // Predicated region
    $region6: #{tpu_custom_call.1} parent=1 // pred_check
      _
    $region7: #{tpu_custom_call.1} parent=1 // pred_check_branch
      %22 = sbr.rel (0) target = $region9
    $region8: #{tpu_custom_call.1} parent=1 // pred_region
      %s24 = ssub.s32 2048, 2048
      %25 = vsyncadd [#allocation6], %s24
      %s26 = sshll.u32 [#allocation5], 4
      %s27 = int_to_ptr.vmem [resolvable:$true] %s26
      %32 = dma.hbm_to_vmem [thread:$0]  %s1, 2048, %s27, [#allocation6], 256, 256, 16
    $region9: #{tpu_custom_call.1} parent=1 // pred_fallthru
      _
    // Predicated region
    $region10: #{tpu_custom_call.1} parent=1 // pred_check
      _
    $region11: #{tpu_custom_call.1} parent=1 // pred_check_branch
      %34 = sbr.rel (0) target = $region13
    $region12: #{tpu_custom_call.1} parent=1 // pred_region
      _
    $region13: #{tpu_custom_call.1} parent=1 // pred_fallthru
      _
    // Predicated region
    $region14: #{tpu_custom_call.1} parent=1 // pred_check
      _
    $region15: #{tpu_custom_call.1} parent=1 // pred_check_branch
      %36 = sbr.rel (0) target = $region17
    $region16: #{tpu_custom_call.1} parent=1 // pred_region
      %37 = dma.done [#allocation3], 128
    $region17: #{tpu_custom_call.1} parent=1 // pred_fallthru
      _
    // Predicated region
    $region18: #{tpu_custom_call.1} parent=1 // pred_check
      _
    $region19: #{tpu_custom_call.1} parent=1 // pred_check_branch
      %39 = sbr.rel (0) target = $region21
    $region20: #{tpu_custom_call.1} parent=1 // pred_region
      %40 = dma.done [#allocation6], 2048
    $region21: #{tpu_custom_call.1} parent=1 // pred_fallthru
      _
    %v41 = vld [vmem:[#allocation2] sm:$0xff]
    %v42 = vld [vmem:[#allocation5] sm:$0xff]
    %v43 = vld [vmem:[#allocation5 + $0x8] sm:$0xff]
    %v44 = vld [vmem:[#allocation5 + $0x10] sm:$0xff]
    %v45 = vld [vmem:[#allocation5 + $0x18] sm:$0xff]
    %v46 = vld [vmem:[#allocation5 + $0x20] sm:$0xff]
    %v47 = vld [vmem:[#allocation5 + $0x28] sm:$0xff]
    %v48 = vld [vmem:[#allocation5 + $0x30] sm:$0xff]
    %v49 = vld [vmem:[#allocation5 + $0x38] sm:$0xff]
    %v50 = vld [vmem:[#allocation5 + $0x40] sm:$0xff]
    %v51 = vld [vmem:[#allocation5 + $0x48] sm:$0xff]
    %v52 = vld [vmem:[#allocation5 + $0x50] sm:$0xff]
    %v53 = vld [vmem:[#allocation5 + $0x58] sm:$0xff]
    %v54 = vld [vmem:[#allocation5 + $0x60] sm:$0xff]
    %v55 = vld [vmem:[#allocation5 + $0x68] sm:$0xff]
    %v56 = vld [vmem:[#allocation5 + $0x70] sm:$0xff]
    %v57 = vld [vmem:[#allocation5 + $0x78] sm:$0xff]
    %v58 = vld [vmem:[%s2] sm:$0x3]
    %v60 = vlaneseq
    %v61 = vshrl.u32 %v60, 7
    %v62 = vsub.s32 0, %v61
    %v63 = vrot.slane %v58, %v62
    %v64 = vlaneseq
    %v65 = vshrl.u32 %v64, 7
    %v66 = vsub.s32 1, %v65
    %v67 = vrot.slane %v58, %v66
    %vm70 = vcmask 523264
    %v72 = vsel %vm70, %v41, 0
    %74 = vmatprep.subr.mxu0 %v43
    %75 = vmatpush1.msra.mxu0 %v42
    %76 = vmatprep.subr.mxu0 %v45
    %77 = vmatpush1.msra.mxu0 %v44
    %78 = vmatprep.subr.mxu0 %v47
    %79 = vmatpush1.msra.mxu0 %v46
    %80 = vmatprep.subr.mxu0 %v49
    %81 = vmatpush1.msra.mxu0 %v48
    %82 = vmatprep.subr.mxu0 %v51
    %83 = vmatpush1.msra.mxu0 %v50
    %84 = vmatprep.subr.mxu0 %v53
    %85 = vmatpush1.msra.mxu0 %v52
    %86 = vmatprep.subr.mxu0 %v55
    %87 = vmatpush1.msra.mxu0 %v54
    %88 = vmatprep.subr.mxu0 %v57
    %89 = vmatpush1.msra.mxu0 %v56
    %90 = vmatprep.subr.mxu0 0.0
    %91 = vmatpush1.msra.mxu0 0.0
    %92 = vmatprep.subr.mxu0 0.0
    %93 = vmatpush1.msra.mxu0 0.0
    %94 = vmatprep.subr.mxu0 0.0
    %95 = vmatpush1.msra.mxu0 0.0
    %96 = vmatprep.subr.mxu0 0.0
    %97 = vmatpush1.msra.mxu0 0.0
    %98 = vmatprep.subr.mxu0 0.0
    %99 = vmatpush1.msra.mxu0 0.0
    %100 = vmatprep.subr.mxu0 0.0
    %101 = vmatpush1.msra.mxu0 0.0
    %102 = vmatprep.subr.mxu0 0.0
    %103 = vmatpush1.msra.mxu0 0.0
    %104 = vmatprep.subr.mxu0 0.0
    %105 = vmatpush1.msra.mxu0 0.0
    %106 = vmatprep.subr.mxu0 0.0
    %107 = vmatpush1.msra.mxu0 0.0
    %108 = vmatprep.subr.mxu0 0.0
    %109 = vmatpush1.msra.mxu0 0.0
    %110 = vmatprep.subr.mxu0 0.0
    %111 = vmatpush1.msra.mxu0 0.0
    %112 = vmatprep.subr.mxu0 0.0
    %113 = vmatpush1.msra.mxu0 0.0
    %114 = vmatprep.subr.mxu0 0.0
    %115 = vmatpush1.msra.mxu0 0.0
    %116 = vmatprep.subr.mxu0 0.0
    %117 = vmatpush1.msra.mxu0 0.0
    %118 = vmatprep.subr.mxu0 0.0
    %119 = vmatpush1.msra.mxu0 0.0
    %120 = vmatprep.subr.mxu0 0.0
    %121 = vmatpush1.msra.mxu0 0.0
    %122 = vmatprep.subr.mxu0 0.0
    %123 = vmatpush1.msra.mxu0 0.0
    %124 = vmatprep.subr.mxu0 0.0
    %125 = vmatpush1.msra.mxu0 0.0
    %126 = vmatprep.subr.mxu0 0.0
    %127 = vmatpush1.msra.mxu0 0.0
    %128 = vmatprep.subr.mxu0 0.0
    %129 = vmatpush1.msra.mxu0 0.0
    %130 = vmatprep.subr.mxu0 0.0
    %131 = vmatpush1.msra.mxu0 0.0
    %132 = vmatprep.subr.mxu0 0.0
    %133 = vmatpush1.msra.mxu0 0.0
    %134 = vmatprep.subr.mxu0 0.0
    %135 = vmatpush1.msra.mxu0 0.0
    %136 = vmatprep.subr.mxu0 0.0
    %137 = vmatpush1.msra.mxu0 0.0
    %138 = vmatprep.mubr.f32.mxu0 0.0
    %139 = vmatmul.mubr.f32.gmra.mrb[0].mxu0 %v72
    %v140 = vpop.f32.mrb[0].mxu0
    %v141 = vadd.f32 %v63, %v140
    %v142 = vpop.f32.mrb[0].mxu0
    %v143 = vadd.f32 %v67, %v142
    %144 = vdwg.mxu0
    %v145 = vmax.f32 %v141, 0.0
    %v146 = vmax.f32 %v143, 0.0
    %147 = vst [vmem:[#allocation7] sm:$0xff] %v145
    %148 = vst [vmem:[#allocation7 + $0x8] sm:$0xff] %v146
    // Predicated region
    $region22: #{tpu_custom_call.1} parent=1 // pred_check
      _
    $region23: #{tpu_custom_call.1} parent=1 // pred_check_branch
      %150 = sbr.rel (0) target = $region25
    $region24: #{tpu_custom_call.1} parent=1 // pred_region
      %s152 = ssub.s32 256, 256
      %153 = vsyncadd [#allocation4], %s152
      %s155 = sshll.u32 [#allocation7], 4
      %s156 = int_to_ptr.vmem [resolvable:$true] %s155
      %158 = dma.vmem_to_hbm [thread:$0]  %s156, 256, %s3, [#allocation4]
    $region25: #{tpu_custom_call.1} parent=1 // pred_fallthru
      _
    // Predicated region
    $region26: #{tpu_custom_call.1} parent=1 // pred_check
      _
    $region27: #{tpu_custom_call.1} parent=1 // pred_check_branch
      %160 = sbr.rel (0) target = $region29
    $region28: #{tpu_custom_call.1} parent=1 // pred_region
      %161 = dma.done [#allocation4], 256
    $region29: #{tpu_custom_call.1} parent=1 // pred_fallthru
      _
    %162 = vsyncpa [#allocation3], 1
    %163 = vsyncpa [#allocation6], 1
    %164 = vsyncpa [#allocation4], 1

</llo_original>
